<compile_context>
chip_gen: v5e
topology: v5e:2x2
jax: 0.10.0
libtpu: 0.0.40
codegen_flags: <defaults>
</compile_context>

<pallas_src>
import functools

import jax
import jax.numpy as jnp
from jax.experimental import pallas as pl
from jax.experimental.pallas import tpu as pltpu

SMOOTHING = 0.1
CONFIDENCE = 1.0 - SMOOTHING
_OUT_LANES = 128  # lane-dense partial-sum output width


def label_smoothing_kernel(x_ref, tgt_ref, out_ref, *, n_rows, tile_n, inv_c):
    """One row tile: (TN, C) logits + (TN, 1) targets -> (1, 1, 128) partial sum."""
    i = pl.program_id(0)

    x = x_ref[...].astype(jnp.float32)                        # (TN, C)
    tn, c = x.shape

    # Row-wise stabilized logsumexp; logprobs tile is never materialized.
    m = jnp.max(x, axis=-1, keepdims=True)                    # (TN, 1)
    s = jnp.sum(jnp.exp(x - m), axis=-1, keepdims=True)       # (TN, 1)
    lse = m + jnp.log(s)                                      # (TN, 1)

    # Fused weighted reduction (replaces separate x[target] gather + sum_x):
    #   loss_row = lse - (CONF * x[target] + SMOOTH/C * sum_x)
    tgt = tgt_ref[...]                                        # (TN, 1) int32
    col = jax.lax.broadcasted_iota(jnp.int32, (tn, c), 1)     # (TN, C)
    w_other = jnp.float32(SMOOTHING * inv_c)
    w_tgt = jnp.float32(CONFIDENCE + SMOOTHING * inv_c)
    w = jnp.where(col == tgt, w_tgt, w_other)                 # (TN, C)
    wsum = jnp.sum(x * w, axis=-1, keepdims=True)             # (TN, 1)

    loss = lse - wsum                                         # (TN, 1)

    # Mask rows past the true batch size (remainder tile contributes 0).
    row = jax.lax.broadcasted_iota(jnp.int32, (tn, 1), 0) + i * tile_n
    loss = jnp.where(row < n_rows, loss, 0.0)

    out_ref[...] = jnp.full(out_ref.shape, jnp.sum(loss), dtype=jnp.float32)


def _vmem_limit_bytes():
    """Scoped VMEM request: <= 3/4 of physical, never more than 48 MiB."""
    cap = 64 << 20  # conservative default = v7x physical VMEM per TensorCore
    try:
        info = pltpu.get_tpu_info()
        cap = int(getattr(info, "vmem_capacity_bytes", cap))
    except Exception:
        pass
    return int(min(48 << 20, (cap * 3) // 4))


def _choose_tile_n(n, c, itemsize, vmem_limit):
    """Pick (tile_n, buffer_count).

    tile_n targets ~8 MiB of logits per input buffer (HBM roofline), is
    shrunk (in multiples of 8) until double-buffered input + f32 temporaries
    fit comfortably in the scoped VMEM budget, and is split so there are at
    least 2 grid steps whenever N >= 16 (v7x dual-TC sharding).
    """
    in_row = c * itemsize        # bytes per row of the streamed logits block
    tmp_row = 2 * c * 4          # f32 cast + ~1 more live f32 temp per row
    budget = int(vmem_limit * 0.6)

    def fits(tn, nbuf):
        return nbuf * tn * in_row + tn * tmp_row <= budget

    # Target ~8 MiB per input buffer.
    tn = max(8, ((8 << 20) // in_row) // 8 * 8)
    while tn > 8 and not fits(tn, 2):
        tn = max(8, (tn // 2) // 8 * 8)   # stays a multiple of 8

    n8 = ((n + 7) // 8) * 8
    if tn >= n8:
        if n >= 16:
            # Split into (at least) two tiles so the 'parallel' grid axis has
            # work for both v7x TensorCores; free on single-TC chips.
            tn = max(8, ((pl.cdiv(n, 2) + 7) // 8) * 8)
        else:
            return n, 2  # tiny batch: single full-extent block

    # Deeper input buffering only for the huge-C regime (tiny tiles, long
    # grid) and only if the third buffer fits the VMEM budget.
    num_tiles = pl.cdiv(n, tn)
    nbuf = 3 if (tn <= 32 and num_tiles >= 16 and fits(tn, 3)) else 2
    return tn, nbuf


def label_smoothing_loss(x, target):
    """x: (N, C) float logits (f32/bf16), target: (N,) int classes -> scalar mean loss."""
    n, c = x.shape
    tgt2d = target.astype(jnp.int32).reshape(n, 1)

    vmem_limit = _vmem_limit_bytes()
    itemsize = jnp.dtype(x.dtype).itemsize
    tn, nbuf = _choose_tile_n(n, c, itemsize, vmem_limit)
    num_tiles = pl.cdiv(n, tn)

    kernel = functools.partial(
        label_smoothing_kernel, n_rows=n, tile_n=tn, inv_c=1.0 / c
    )

    x_spec_kwargs = {}
    if nbuf > 2:
        x_spec_kwargs["pipeline_mode"] = pl.Buffered(nbuf)

    partials = pl.pallas_call(
        kernel,
        out_shape=jax.ShapeDtypeStruct((num_tiles, 1, _OUT_LANES), jnp.float32),
        grid=(num_tiles,),
        in_specs=[
            pl.BlockSpec((tn, c), lambda i: (i, 0), **x_spec_kwargs),
            pl.BlockSpec((tn, 1), lambda i: (i, 0)),
        ],
        out_specs=pl.BlockSpec((1, 1, _OUT_LANES), lambda i: (i, 0, 0)),
        compiler_params=pltpu.CompilerParams(
            dimension_semantics=("parallel",),
            vmem_limit_bytes=vmem_limit,
        ),
    )(x, tgt2d)

    # Each tile broadcast its partial sum across the 128 output lanes; take lane 0.
    return jnp.sum(partials[:, 0, 0]) * (1.0 / n)


def _reference(x, target):
    logprobs = jax.nn.log_softmax(x.astype(jnp.float32), axis=-1)
    nll = -jnp.take_along_axis(logprobs, target[:, None], axis=-1)[:, 0]
    smooth = -jnp.mean(logprobs, axis=-1)
    return jnp.mean(CONFIDENCE * nll + SMOOTHING * smooth)


if __name__ == "__main__":
    key = jax.random.PRNGKey(0)
    kx, kt = jax.random.split(key)

    N, C = 16, 128
    x = jax.random.normal(kx, (N, C), dtype=jnp.float32)
    target = jax.random.randint(kt, (N,), 0, C, dtype=jnp.int32)

    ref = _reference(x, target)

    # Default path: auto tile sizing -> 2 row tiles at N=16 (dual-TC shardable).
    loss = jax.block_until_ready(label_smoothing_loss(x, target))
    assert jnp.allclose(loss, ref, atol=1e-5, rtol=1e-5), (loss, ref)

    # Single full-extent tile path (tiny batch).
    loss_small = jax.block_until_ready(label_smoothing_loss(x[:8], target[:8]))
    ref_small = _reference(x[:8], target[:8])
    assert jnp.allclose(loss_small, ref_small, atol=1e-5, rtol=1e-5), (loss_small, ref_small)

    # Narrow-dtype (bf16) logits streamed straight through the BlockSpec.
    x_bf16 = x.astype(jnp.bfloat16)
    loss_bf16 = jax.block_until_ready(label_smoothing_loss(x_bf16, target))
    ref_bf16 = _reference(x_bf16.astype(jnp.float32), target)
    assert jnp.allclose(loss_bf16, ref_bf16, atol=1e-4, rtol=1e-4), (loss_bf16, ref_bf16)

    print("KERNEL_OK")
</pallas_src>

<mosaic_0001>
module attributes {stable_mosaic.version = 11 : i64} {
  func.func @label_smoothing_kernel(%arg0: i32, %arg1: memref<8x128xf32, #tpu.memory_space<vmem>>, %arg2: memref<8x1xi32, #tpu.memory_space<vmem>>, %arg3: memref<1x1x128xf32, #tpu.memory_space<vmem>>) attributes {dimension_semantics = [#tpu.dimension_semantics<parallel>], iteration_bounds = array<i64: 2>, scalar_prefetch = 0 : i64, scratch_operands = 0 : i64, tpu.core_type = #tpu.core_type<tc>, window_params = [{transform_indices = @transform_0, window_bounds = array<i64: 8, 128>}, {transform_indices = @transform_1, window_bounds = array<i64: 8, 1>}, {transform_indices = @transform_2, window_bounds = array<i64: 1, 1, 128>}]} {
    %c0 = arith.constant 0 : index
    %c0_0 = arith.constant 0 : index
    %0 = vector.load %arg1[%c0, %c0_0] : memref<8x128xf32, #tpu.memory_space<vmem>>, vector<8x128xf32>
    %cst = arith.constant dense<0xFF800000> : vector<8xf32>
    %1 = vector.multi_reduction <maximumf>, %0, %cst [1] : vector<8x128xf32> to vector<8xf32>
    %2 = vector.shape_cast %1 : vector<8xf32> to vector<8x1xf32>
    %3 = vector.broadcast %2 : vector<8x1xf32> to vector<8x128xf32>
    %4 = arith.subf %0, %3 : vector<8x128xf32>
    %5 = math.exp %4 : vector<8x128xf32>
    %cst_1 = arith.constant dense<0.000000e+00> : vector<8xf32>
    %6 = vector.multi_reduction <add>, %5, %cst_1 [1] : vector<8x128xf32> to vector<8xf32>
    %7 = vector.shape_cast %6 : vector<8xf32> to vector<8x1xf32>
    %8 = math.log %7 : vector<8x1xf32>
    %9 = arith.addf %2, %8 : vector<8x1xf32>
    %c0_2 = arith.constant 0 : index
    %c0_3 = arith.constant 0 : index
    %10 = vector.load %arg2[%c0_2, %c0_3] : memref<8x1xi32, #tpu.memory_space<vmem>>, vector<8x1xi32>
    %11 = tpu.iota {dimensions = array<i32: 1>} : vector<8x128xi32>
    %12 = vector.broadcast %10 : vector<8x1xi32> to vector<8x128xi32>
    %13 = arith.cmpi eq, %11, %12 : vector<8x128xi32>
    %cst_4 = arith.constant 0.900781273 : f32
    %cst_5 = arith.constant 7.812500e-04 : f32
    %14 = vector.broadcast %cst_4 : f32 to vector<8x128xf32>
    %15 = vector.broadcast %cst_5 : f32 to vector<8x128xf32>
    %16 = arith.select %13, %14, %15 : vector<8x128xi1>, vector<8x128xf32>
    %17 = arith.mulf %0, %16 : vector<8x128xf32>
    %cst_6 = arith.constant dense<0.000000e+00> : vector<8xf32>
    %18 = vector.multi_reduction <add>, %17, %cst_6 [1] : vector<8x128xf32> to vector<8xf32>
    %19 = vector.shape_cast %18 : vector<8xf32> to vector<8x1xf32>
    %20 = arith.subf %9, %19 : vector<8x1xf32>
    %21 = tpu.iota {dimensions = array<i32: 0>} : vector<8x1xi32>
    %c8_i32 = arith.constant 8 : i32
    %22 = arith.muli %arg0, %c8_i32 : i32
    %23 = vector.broadcast %22 : i32 to vector<8x1xi32>
    %24 = arith.addi %21, %23 : vector<8x1xi32>
    %c16_i32 = arith.constant 16 : i32
    %25 = vector.broadcast %c16_i32 : i32 to vector<8x1xi32>
    %26 = arith.cmpi slt, %24, %25 : vector<8x1xi32>
    %cst_7 = arith.constant 0.000000e+00 : f32
    %27 = vector.broadcast %cst_7 : f32 to vector<8x1xf32>
    %28 = arith.select %26, %20, %27 : vector<8x1xi1>, vector<8x1xf32>
    %29 = vector.shape_cast %28 : vector<8x1xf32> to vector<1x8x1xf32>
    %cst_8 = arith.constant dense<0.000000e+00> : vector<1xf32>
    %30 = vector.multi_reduction <add>, %29, %cst_8 [1, 2] : vector<1x8x1xf32> to vector<1xf32>
    %31 = vector.shape_cast %30 : vector<1xf32> to vector<1x1x1xf32>
    %32 = vector.extract %31[0, 0, 0] : f32 from vector<1x1x1xf32>
    %33 = vector.broadcast %32 : f32 to vector<1x1x128xf32>
    %c0_9 = arith.constant 0 : index
    %c0_10 = arith.constant 0 : index
    %c0_11 = arith.constant 0 : index
    %34 = vector.load %arg3[%c0_9, %c0_10, %c0_11] : memref<1x1x128xf32, #tpu.memory_space<vmem>>, vector<1x1x128xf32>
    tpu.vector_store %arg3[%c0_9, %c0_10, %c0_11], %33 {strides = array<i32>} : memref<1x1x128xf32, #tpu.memory_space<vmem>>, vector<1x1x128xf32>,
    return
  }
  func.func @transform_0(%arg0: i32) -> (i32, i32) {
    %c0_i32 = arith.constant 0 : i32
    %c0_i32_0 = arith.constant 0 : i32
    return %arg0, %c0_i32 : i32, i32
  }
  func.func @transform_1(%arg0: i32) -> (i32, i32) {
    %c0_i32 = arith.constant 0 : i32
    %c0_i32_0 = arith.constant 0 : i32
    return %arg0, %c0_i32 : i32, i32
  }
  func.func @transform_2(%arg0: i32) -> (i32, i32, i32) {
    %c0_i32 = arith.constant 0 : i32
    %c0_i32_0 = arith.constant 0 : i32
    %c0_i32_1 = arith.constant 0 : i32
    return %arg0, %c0_i32, %c0_i32_0 : i32, i32, i32
  }
}

</mosaic_0001>

<llo_original>
// kernel: tpu_custom_call.1
$region0: #{tpu_custom_call.1}
  #allocation0 [shape = 'u32[]', space=smem, size = 0x4, offset = 0x4, fixed_abs, tag = 'smem constant byte address 0x4 - core index']
  #allocation1 [shape = 'u32[72,128]{1,0:T(1,128)}', space=vmem, size = 0x9000, scoped, tag = 'internal scratch']
  %s0 = inlined_call_operand.vmem [shape: f32[16,128], index: 0, kind: input, shape index: {}]
  %s1 = inlined_call_operand.vmem [shape: s32[16,1], index: 1, kind: input, shape index: {}]
  %s2 = inlined_call_operand.hbm [shape: f32[2,1,128], index: 2, kind: output, shape index: {}]
  %s3 = sld [smem:[#allocation0]]
  $region41: #{tpu_custom_call.1} parent=0
    _
  %s5 = ssub.s32 1, %s3
  %s6 = scalar_select 0, %s5, %s3
  $region1: #{tpu_custom_call.1} parent=0
    #allocation2 [shape = 'u8[1024]{0}', space=vmem, size = 0x400, scoped, tag = 'output window, operand 0']
    #allocation3 [shape = 's32[2]{0}', space=sflag, size = 0x8, scoped, tag = 'scoped memory for tpu_custom_call.1']
    %7 = vsyncpa [#allocation3], 0
    %s8 = scalar_lea.sflag [#allocation3], 1
    %9 = vsyncpa %s8, 0
    loop: start=0, step=1, limit=4
    $region2: #{tpu_custom_call.1} parent=1 // loop_pre_header
      _
    $region3: #{tpu_custom_call.1} parent=1 // loop_header
      %s11 = sphi 0, %s15
      %p12 = scmp.ge.s32.totalorder %s11, 4
      %s21 = sphi 0, %s23
      %s24 = sphi 0, %s21
      %s25 = sphi 0, %s24
      %s41 = sphi 0, %s25
      %s47 = sphi 0, %s49
      %s50 = sphi 0, %s47
      %s51 = sphi 0, %s50
      %s67 = sphi 0, %s51
      %s73 = sphi 0, %s75
      %s76 = sphi 0, %s73
      %s77 = sphi 0, %s76
      %s93 = sphi 0, %s77
    $region4: #{tpu_custom_call.1} parent=1 // loop_header_branch
      %14 = sbr.rel (%p12) target = $region8
    $region5: #{tpu_custom_call.1} parent=1 // loop_body
      %s16 = ssub.s32 %s11, 1
      %s17 = ssub.s32 %s11, 2
      %s18 = sadd.s32 %s11, 1
      %s19 = ssub.s32 %s11, %s18
      %p20 = scmp.eq.s32.totalorder %s19, 0
      %s22 = sadd.s32 %s21, 1
      %s23 = scalar_select %p20, %s21, %s22
      %p26 = pneg %p20
      %p27 = scmp.eq.s32.totalorder %s11, 1
      %p28 = por %p26, %p27
      %p29 = scmp.ne.s32.totalorder %s21, %s24
      %p30 = scmp.eq.s32.totalorder %s11, 0
      %p31 = por %p29, %p30
      %p32 = scmp.ne.s32.totalorder %s21, %s24
      %p33 = scmp.eq.s32.totalorder %s16, 1
      %p34 = por %p32, %p33
      %p35 = scmp.ne.s32.totalorder %s24, %s25
      %p36 = scmp.eq.s32.totalorder %s16, 0
      %p37 = por %p35, %p36
      %p38 = scmp.ne.s32.totalorder %s24, %s25
      %p39 = scmp.eq.s32.totalorder %s17, 1
      %p40 = por %p38, %p39
      %p42 = scmp.ne.s32.totalorder %s25, %s41
      %p43 = scmp.eq.s32.totalorder %s17, 0
      %p44 = por %p42, %p43
      %s45 = ssub.s32 %s11, %s18
      %p46 = scmp.eq.s32.totalorder %s45, 0
      %s48 = sadd.s32 %s47, 1
      %s49 = scalar_select %p46, %s47, %s48
      %p52 = pneg %p46
      %p53 = scmp.eq.s32.totalorder %s11, 1
      %p54 = por %p52, %p53
      %p55 = scmp.ne.s32.totalorder %s47, %s50
      %p56 = scmp.eq.s32.totalorder %s11, 0
      %p57 = por %p55, %p56
      %p58 = scmp.ne.s32.totalorder %s47, %s50
      %p59 = scmp.eq.s32.totalorder %s16, 1
      %p60 = por %p58, %p59
      %p61 = scmp.ne.s32.totalorder %s50, %s51
      %p62 = scmp.eq.s32.totalorder %s16, 0
      %p63 = por %p61, %p62
      %p64 = scmp.ne.s32.totalorder %s50, %s51
      %p65 = scmp.eq.s32.totalorder %s17, 1
      %p66 = por %p64, %p65
      %p68 = scmp.ne.s32.totalorder %s51, %s67
      %p69 = scmp.eq.s32.totalorder %s17, 0
      %p70 = por %p68, %p69
      %s71 = ssub.s32 %s11, %s18
      %p72 = scmp.eq.s32.totalorder %s71, 0
      %s74 = sadd.s32 %s73, 1
      %s75 = scalar_select %p72, %s73, %s74
      %p78 = pneg %p72
      %p79 = scmp.eq.s32.totalorder %s11, 1
      %p80 = por %p78, %p79
      %p81 = scmp.ne.s32.totalorder %s73, %s76
      %p82 = scmp.eq.s32.totalorder %s11, 0
      %p83 = por %p81, %p82
      %p84 = scmp.ne.s32.totalorder %s73, %s76
      %p85 = scmp.eq.s32.totalorder %s16, 1
      %p86 = por %p84, %p85
      %p87 = scmp.ne.s32.totalorder %s76, %s77
      %p88 = scmp.eq.s32.totalorder %s16, 0
      %p89 = por %p87, %p88
      %p90 = scmp.ne.s32.totalorder %s76, %s77
      %p91 = scmp.eq.s32.totalorder %s17, 1
      %p92 = por %p90, %p91
      %p94 = scmp.ne.s32.totalorder %s77, %s93
      %p95 = scmp.eq.s32.totalorder %s17, 0
      %p96 = por %p94, %p95
      %p97 = scmp.le.s32.totalorder 1, %s11
      %p98 = scmp.lt.s32.totalorder %s11, 3
      %p99 = pnand %p97, %p98
      %p100 = pneg %p99
      // Predicated region
      $region9: #{tpu_custom_call.1} parent=5 // pred_check
        _
      $region10: #{tpu_custom_call.1} parent=5 // pred_check_branch
        %102 = sbr.rel (%p99) target = $region12
      $region11: #{tpu_custom_call.1} parent=5 // pred_region
        %s103 = ssub.s32 %s11, 1
      $region12: #{tpu_custom_call.1} parent=5 // pred_fallthru
        _
      %p104 = scmp.lt.s32.totalorder %s11, 2
      // Predicated region
      $region13: #{tpu_custom_call.1} parent=5 // pred_check
        %p105 = pneg %p104
      $region14: #{tpu_custom_call.1} parent=5 // pred_check_branch
        %107 = sbr.rel (%p105) target = $region16
      $region15: #{tpu_custom_call.1} parent=5 // pred_region
        // Predicated region
        $region17: #{tpu_custom_call.1} parent=15 // pred_check
          %p108 = pneg %p31
        $region18: #{tpu_custom_call.1} parent=15 // pred_check_branch
          %110 = sbr.rel (%p108) target = $region20
        $region19: #{tpu_custom_call.1} parent=15 // pred_region
          %p111 = scmp.lt.s32.totalorder %s11, 1
          %s112 = scalar_select %p111, %s11, 1
          %s113 = smul.addr %s112, 8
          %s114 = scalar_lea.vmem %s0, %s113
        $region20: #{tpu_custom_call.1} parent=15 // pred_fallthru
          _
        // Predicated region
        $region21: #{tpu_custom_call.1} parent=15 // pred_check
          %p115 = pneg %p57
        $region22: #{tpu_custom_call.1} parent=15 // pred_check_branch
          %117 = sbr.rel (%p115) target = $region24
        $region23: #{tpu_custom_call.1} parent=15 // pred_region
          %p118 = scmp.lt.s32.totalorder %s11, 1
          %s119 = scalar_select %p118, %s11, 1
          %s120 = smul.addr %s119, 8
          %s121 = scalar_lea.vmem %s1, %s120
        $region24: #{tpu_custom_call.1} parent=15 // pred_fallthru
          _
      $region16: #{tpu_custom_call.1} parent=5 // pred_fallthru
        _
      %p122 = scmp.le.s32.totalorder 1, %s11
      %p123 = scmp.lt.s32.totalorder %s11, 3
      %p124 = pnand %p122, %p123
      %p125 = pneg %p124
      // Predicated region
      $region25: #{tpu_custom_call.1} parent=5 // pred_check
        _
      $region26: #{tpu_custom_call.1} parent=5 // pred_check_branch
        %127 = sbr.rel (%p124) target = $region28
      $region27: #{tpu_custom_call.1} parent=5 // pred_region
        %s128 = ssub.s32 %s11, 1
        %p129 = scmp.lt.s32.totalorder %s16, 1
        %s130 = scalar_select %p129, %s16, 1
        %s131 = smul.addr %s130, 8
        %s132 = scalar_lea.vmem %s0, %s131
        %p133 = pneg %p37
        %p134 = pneg %p34
        %p135 = scmp.lt.s32.totalorder %s16, 1
        %s136 = scalar_select %p135, %s16, 1
        %s137 = smul.addr %s136, 8
        %s138 = scalar_lea.vmem %s1, %s137
        %p139 = pneg %p63
        %p140 = pneg %p60
        %p141 = pneg %p89
        %p142 = pneg %p86
        %s143 = sand.u32 %s76, 1
        %s144 = scalar_lea.sflag [#allocation3], %s143
        %s145 = sand.u32 %s76, 1
        %s146 = scalar_lea.vmem [#allocation2], %s145
        %p147 = scmp.lt.s32.totalorder %s16, 1
        %s148 = scalar_select %p147, %s16, 1
        %s149 = smul.addr %s148, 8
        %s150 = scalar_lea.vmem %s0, %s149
        %p151 = scmp.lt.s32.totalorder %s16, 1
        %s152 = scalar_select %p151, %s16, 1
        %s153 = smul.addr %s152, 8
        %s154 = scalar_lea.vmem %s1, %s153
        %v155 = vld [vmem:[%s150] sm:$0xff]
        %156 = vmax.xlane.f32.xlu0 %v155
        %v157 = vpop.xlane.xlu0 %156
        %v158 = vsub.f32 %v155, %v157
        %v159 = vmul.f32 %v158, 1.442695
        %v160 = vpow.pop %v159
        %161 = vadd.xlane.f32.xlu0 %v160
        %v162 = vpop.xlane.xlu0 %161
        %v163 = vlog2.pop %v162
        %v164 = vmul.f32 %v163, 0.6931472
        %v165 = vadd.f32 %v157, %v164
        %v166 = vld [vmem:[%s154] sm:$0xff]
        %v167 = vlaneseq
        %v168 = vand.u32 %v167, 127
        %169 = vset.pattern.permute.xlu0 0
        %170 = vperm.xlu0 %169, %v166
        %v171 = vpop.permute.xlu0 %170
        %vm172 = vcmp.eq.s32.totalorder %v168, %v171
        %v173 = vsel %vm172, 0.9007813, 0.00078125
        %v174 = vmul.f32 %v155, %v173
        %175 = vadd.xlane.f32.xlu0 %v174
        %v176 = vpop.xlane.xlu0 %175
        %v177 = vsub.f32 %v165, %v176
        %v178 = vlaneseq
        %v179 = vshrl.u32 %v178, 7
        %s180 = smul.u32 %s16, 8
        %v181 = vstv %s180
        %v182 = vadd.s32 %v179, %v181
        %vm183 = vcmp.lt.s32.totalorder %v182, 16
        %v184 = vsel %vm183, %v177, 0.0
        %vm185 = vcmask 7168
        %v186 = vsel %vm185, %v184, 0.0
        %187 = vadd.xlane.f32.xlu0 %v186
        %v188 = vpop.xlane.xlu0 %187
        %v189 = vrot.slane %v188, 4
        %v190 = vadd.f32 %v188, %v189
        %v191 = vrot.slane %v190, 2
        %v192 = vadd.f32 %v190, %v191
        %v193 = vrot.slane %v192, 1
        %v194 = vadd.f32 %v192, %v193
        %s195 = vtos %v194
        %v196 = vstv %s195
        %197 = vst [vmem:[%s146] sm:$0x1] %v196
        %s198 = sand.u32 %s76, 1
        %s199 = scalar_lea.sflag [#allocation3], %s198
        %s200 = sand.u32 %s76, 1
        %s201 = scalar_lea.vmem [#allocation2], %s200
        // Predicated region
        $region29: #{tpu_custom_call.1} parent=27 // pred_check
          %p202 = pneg %p86
        $region30: #{tpu_custom_call.1} parent=27 // pred_check_branch
          %204 = sbr.rel (%p202) target = $region32
        $region31: #{tpu_custom_call.1} parent=27 // pred_region
          %206 = vsyncadd %s199, 0
          %s207 = scalar_lea.hbm %s2, %s16
          %s209 = sshll.u32 %s201, 4
          %s210 = int_to_ptr.vmem [resolvable:$true] %s209
          %s211 = sshll.u32 %s207, 4
          %s212 = int_to_ptr.hbm [resolvable:$true] %s211
          %214 = dma.vmem_to_hbm [thread:$0]  %s210, 16, %s212, %s199
        $region32: #{tpu_custom_call.1} parent=27 // pred_fallthru
          _
      $region28: #{tpu_custom_call.1} parent=5 // pred_fallthru
        _
      %p215 = scmp.le.s32.totalorder 2, %s11
      // Predicated region
      $region33: #{tpu_custom_call.1} parent=5 // pred_check
        %p216 = pneg %p215
      $region34: #{tpu_custom_call.1} parent=5 // pred_check_branch
        %218 = sbr.rel (%p216) target = $region36
      $region35: #{tpu_custom_call.1} parent=5 // pred_region
        %s219 = ssub.s32 %s11, 2
        // Predicated region
        $region37: #{tpu_custom_call.1} parent=35 // pred_check
          %p220 = pneg %p92
        $region38: #{tpu_custom_call.1} parent=35 // pred_check_branch
          %222 = sbr.rel (%p220) target = $region40
        $region39: #{tpu_custom_call.1} parent=35 // pred_region
          %s223 = sand.u32 %s77, 1
          %s224 = scalar_lea.sflag [#allocation3], %s223
          %s225 = sand.u32 %s77, 1
          %s226 = scalar_lea.vmem [#allocation2], %s225
          %228 = dma.done %s224, 16
        $region40: #{tpu_custom_call.1} parent=35 // pred_fallthru
          _
      $region36: #{tpu_custom_call.1} parent=5 // pred_fallthru
        _
    $region6: #{tpu_custom_call.1} parent=1 // loop_footer
      %s15 = sadd.s32 1, %s11
    $region7: #{tpu_custom_call.1} parent=1 // loop_footer_branch
      %10 = sbr.rel target = $region3
    $region8: #{tpu_custom_call.1} parent=1 // loop_exit
      _
    %229 = vsyncpa [#allocation3], 1
    %s230 = scalar_lea.sflag [#allocation3], 1
    %231 = vsyncpa %s230, 1

</llo_original>
